<compile_context>
chip_gen: v7x
topology: tpu7x:2x2x1
jax: 0.10.0
libtpu: 0.0.40
codegen_flags: <defaults>
</compile_context>

<pallas_src>
import jax
import jax.numpy as jnp
from jax.experimental import pallas as pl
from jax.experimental.pallas import tpu as pltpu


OBS_DIM = 40      # 9 vel + 9 torque + 9 pos + 3 obj_pos + 4 obj_ori + 3 goal + 3 achieved
ACT_DIM = 9       # trifinger torque action
IN_DIM = OBS_DIM + ACT_DIM          # 49
HIDDEN = 256
OUT_DIM = 1

ACT_PAD = 16      # action lanes padded to the bf16 packing boundary (>= 9)
TB_MAX = 1024     # max batch-tile rows per grid step
SPLIT_B = 32      # above this batch size, force >= 2 grid steps (v7x 2 TCs)


def _round_up(n, m):
    return ((n + m - 1) // m) * m


def _tiling(batch):
    """Pick (num_tiles, TB, Bp) from the tile COUNT so padding stays small."""
    num_tiles = -(-batch // TB_MAX)                  # cdiv
    if num_tiles == 1 and batch > SPLIT_B:
        num_tiles = 2                                # let v7x use both TCs
    tb = _round_up(-(-batch // num_tiles), 16)       # 16: bf16 sublane pack
    return num_tiles, tb, num_tiles * tb


def _qnet_kernel(x_ref, a_ref, w1o_ref, w1a_ref, b1_ref, w2_ref, b2_ref,
                 w3_ref, b3_ref, o_ref):
    """relu(obs@w1o + act@w1a + b1) -> relu(. @ w2 + b2) -> row-dot(w3) + b3."""
    xo = x_ref[...].astype(jnp.bfloat16)                          # (TB, 40)
    h1 = (jnp.dot(xo, w1o_ref[...], preferred_element_type=jnp.float32)
          + jnp.dot(a_ref[...], w1a_ref[...],
                    preferred_element_type=jnp.float32)
          + b1_ref[...])
    h1 = jnp.maximum(h1, 0.0)                                     # (TB, 256) f32
    h2 = jnp.dot(h1.astype(jnp.bfloat16), w2_ref[...],
                 preferred_element_type=jnp.float32) + b2_ref[...]
    h2 = jnp.maximum(h2, 0.0)                                     # (TB, 256) f32
    # fc3 has N=1: its MXU push cost would equal fc2's for 1/256 of the useful
    # output, so do it as a VPU multiply + XLU row-reduction in f32 instead.
    o_ref[...] = jnp.sum(h2 * w3_ref[...], axis=-1, keepdims=True) + b3_ref[...]


def prepare_params(params):
    """One-time weight split/pad + bf16 cast.  Call once, reuse every forward."""
    w1, b1, w2, b2, w3, b3 = (params[k] for k in ("w1", "b1", "w2", "b2", "w3", "b3"))
    w1o = w1[:OBS_DIM, :]                                                   # (40, 256)
    w1a = jnp.zeros((ACT_PAD, HIDDEN), jnp.float32).at[:ACT_DIM, :].set(w1[OBS_DIM:, :])
    return {
        "w1o": w1o.astype(jnp.bfloat16),
        "w1a": w1a.astype(jnp.bfloat16),
        "b1": b1.reshape(1, HIDDEN).astype(jnp.float32),
        "w2": w2.astype(jnp.bfloat16),
        "b2": b2.reshape(1, HIDDEN).astype(jnp.float32),
        "w3": w3.reshape(1, HIDDEN).astype(jnp.float32),    # (256,1) -> row (1,256), f32 for VPU fc3
        "b3": b3.reshape(1, OUT_DIM).astype(jnp.float32),   # (1, 1)
    }


@jax.jit
def qnetwork_forward(x, a, prepped):
    """x: (B, OBS_DIM) f32, a: (B, ACT_DIM) f32 -> (B, 1) f32."""
    B = x.shape[0]
    num_tiles, TB, Bp = _tiling(B)

    # Obs goes to the kernel as raw f32 (no staging copy); act is zero-padded
    # to 16 lanes (+ batch pad) and cast to bf16 in one tiny fused op.
    x_p = x.astype(jnp.float32)
    if Bp != B:
        x_p = jnp.pad(x_p, ((0, Bp - B), (0, 0)))                     # (Bp, 40)
    a_p = jnp.pad(a.astype(jnp.float32),
                  ((0, Bp - B), (0, ACT_PAD - ACT_DIM))).astype(jnp.bfloat16)  # (Bp, 16)

    flops = 2 * Bp * (IN_DIM * HIDDEN + HIDDEN * HIDDEN + HIDDEN)
    bytes_accessed = (
        Bp * (OBS_DIM * 4 + ACT_PAD * 2 + OUT_DIM * 4)
        + (OBS_DIM * HIDDEN + ACT_PAD * HIDDEN + HIDDEN * HIDDEN) * 2
        + (2 * HIDDEN + HIDDEN + OUT_DIM) * 4)

    out_p = pl.pallas_call(
        _qnet_kernel,
        out_shape=jax.ShapeDtypeStruct((Bp, OUT_DIM), jnp.float32),
        grid=(num_tiles,),
        in_specs=[
            pl.BlockSpec((TB, OBS_DIM), lambda i: (i, 0)),       # obs tile (f32)
            pl.BlockSpec((TB, ACT_PAD), lambda i: (i, 0)),       # act tile (bf16)
            pl.BlockSpec((OBS_DIM, HIDDEN), lambda i: (0, 0)),   # weights: VMEM-resident
            pl.BlockSpec((ACT_PAD, HIDDEN), lambda i: (0, 0)),
            pl.BlockSpec((1, HIDDEN), lambda i: (0, 0)),
            pl.BlockSpec((HIDDEN, HIDDEN), lambda i: (0, 0)),
            pl.BlockSpec((1, HIDDEN), lambda i: (0, 0)),
            pl.BlockSpec((1, HIDDEN), lambda i: (0, 0)),         # w3 row (f32)
            pl.BlockSpec((1, OUT_DIM), lambda i: (0, 0)),        # b3
        ],
        out_specs=pl.BlockSpec((TB, OUT_DIM), lambda i: (i, 0)),
        compiler_params=pltpu.CompilerParams(
            dimension_semantics=("parallel",)),
        cost_estimate=pl.CostEstimate(flops=flops, transcendentals=0,
                                      bytes_accessed=bytes_accessed),
    )(x_p, a_p, prepped["w1o"], prepped["w1a"], prepped["b1"],
      prepped["w2"], prepped["b2"], prepped["w3"], prepped["b3"])

    return out_p[:B, :]                                          # (B, 1)


def init_params(key):
    """Deterministic init mimicking nn.Linear default (U[-1/sqrt(fan_in), +])."""
    ks = jax.random.split(key, 6)

    def linear(kw, kb, fan_in, fan_out):
        bound = 1.0 / jnp.sqrt(float(fan_in))
        w = jax.random.uniform(kw, (fan_in, fan_out), jnp.float32, -bound, bound)
        b = jax.random.uniform(kb, (fan_out,), jnp.float32, -bound, bound)
        return w, b

    w1, b1 = linear(ks[0], ks[1], IN_DIM, HIDDEN)
    w2, b2 = linear(ks[2], ks[3], HIDDEN, HIDDEN)
    w3, b3 = linear(ks[4], ks[5], HIDDEN, OUT_DIM)
    return {"w1": w1, "b1": b1, "w2": w2, "b2": b2, "w3": w3, "b3": b3}


def reference_forward(x, a, params):
    """Plain-JAX f32 reference for correctness checking."""
    xa = jnp.concatenate([x, a], axis=1)
    h1 = jnp.maximum(xa @ params["w1"] + params["b1"], 0.0)
    h2 = jnp.maximum(h1 @ params["w2"] + params["b2"], 0.0)
    return h2 @ params["w3"] + params["b3"]


if __name__ == "__main__":
    key = jax.random.PRNGKey(0)
    k_p, k_x, k_a = jax.random.split(key, 3)

    params = init_params(k_p)
    prepped = prepare_params(params)        # split/pad + bf16-cast weights once

    # Small batch (B=2): single-tile path.
    B = 2
    x = jax.random.normal(k_x, (B, OBS_DIM), jnp.float32)
    a = jax.random.normal(k_a, (B, ACT_DIM), jnp.float32)
    out = jax.block_until_ready(qnetwork_forward(x, a, prepped))
    ref = reference_forward(x, a, params)
    assert out.shape == (B, OUT_DIM), out.shape
    # bf16 weights/activations with f32 accumulation -> loosened tolerance.
    assert jnp.allclose(out, ref, atol=2e-2, rtol=2e-2), (out, ref)

    # Larger batch to exercise the multi-tile grid and batch padding
    # (B=700 -> 2 tiles of 352 rows, Bp=704).
    B2 = 700
    x2 = jax.random.normal(k_x, (B2, OBS_DIM), jnp.float32)
    a2 = jax.random.normal(k_a, (B2, ACT_DIM), jnp.float32)
    out2 = jax.block_until_ready(qnetwork_forward(x2, a2, prepped))
    ref2 = reference_forward(x2, a2, params)
    assert out2.shape == (B2, OUT_DIM), out2.shape
    assert jnp.allclose(out2, ref2, atol=2e-2, rtol=2e-2)

    print("KERNEL_OK")
</pallas_src>

<mosaic_0001>
module attributes {stable_mosaic.version = 11 : i64} {
  func.func @_qnet_kernel(%arg0: i32, %arg1: memref<16x40xf32, #tpu.memory_space<vmem>>, %arg2: memref<16x16xbf16, #tpu.memory_space<vmem>>, %arg3: memref<40x256xbf16, #tpu.memory_space<vmem>>, %arg4: memref<16x256xbf16, #tpu.memory_space<vmem>>, %arg5: memref<1x256xf32, #tpu.memory_space<vmem>>, %arg6: memref<256x256xbf16, #tpu.memory_space<vmem>>, %arg7: memref<1x256xf32, #tpu.memory_space<vmem>>, %arg8: memref<1x256xf32, #tpu.memory_space<vmem>>, %arg9: memref<1x1xf32, #tpu.memory_space<vmem>>, %arg10: memref<16x1xf32, #tpu.memory_space<vmem>>) attributes {dimension_semantics = [#tpu.dimension_semantics<parallel>], iteration_bounds = array<i64: 1>, scalar_prefetch = 0 : i64, scratch_operands = 0 : i64, tpu.core_type = #tpu.core_type<tc>, window_params = [{transform_indices = @transform_0, window_bounds = array<i64: 16, 40>}, {transform_indices = @transform_1, window_bounds = array<i64: 16, 16>}, {pipeline_mode = #tpu.pipeline_mode<synchronous>, transform_indices = @transform_2, window_bounds = array<i64: 40, 256>}, {pipeline_mode = #tpu.pipeline_mode<synchronous>, transform_indices = @transform_3, window_bounds = array<i64: 16, 256>}, {pipeline_mode = #tpu.pipeline_mode<synchronous>, transform_indices = @transform_4, window_bounds = array<i64: 1, 256>}, {pipeline_mode = #tpu.pipeline_mode<synchronous>, transform_indices = @transform_5, window_bounds = array<i64: 256, 256>}, {pipeline_mode = #tpu.pipeline_mode<synchronous>, transform_indices = @transform_6, window_bounds = array<i64: 1, 256>}, {pipeline_mode = #tpu.pipeline_mode<synchronous>, transform_indices = @transform_7, window_bounds = array<i64: 1, 256>}, {pipeline_mode = #tpu.pipeline_mode<synchronous>, transform_indices = @transform_8, window_bounds = array<i64: 1, 1>}, {transform_indices = @transform_9, window_bounds = array<i64: 16, 1>}]} {
    %c0 = arith.constant 0 : index
    %c0_0 = arith.constant 0 : index
    %0 = vector.load %arg1[%c0, %c0_0] : memref<16x40xf32, #tpu.memory_space<vmem>>, vector<16x40xf32>
    %1 = arith.truncf %0 : vector<16x40xf32> to vector<16x40xbf16>
    %c0_1 = arith.constant 0 : index
    %c0_2 = arith.constant 0 : index
    %2 = vector.load %arg3[%c0_1, %c0_2] : memref<40x256xbf16, #tpu.memory_space<vmem>>, vector<40x256xbf16>
    %cst = arith.constant dense<0.000000e+00> : vector<16x256xf32>
    %3 = tpu.matmul %1, %2, %cst {dimension_numbers = #tpu.dot_dimension_numbers<[1], [0], [0], [1], [0, 0, 1, 1], [], []>} : vector<16x40xbf16>, vector<40x256xbf16>, vector<16x256xf32> -> vector<16x256xf32>
    %c0_3 = arith.constant 0 : index
    %c0_4 = arith.constant 0 : index
    %4 = vector.load %arg2[%c0_3, %c0_4] : memref<16x16xbf16, #tpu.memory_space<vmem>>, vector<16x16xbf16>
    %c0_5 = arith.constant 0 : index
    %c0_6 = arith.constant 0 : index
    %5 = vector.load %arg4[%c0_5, %c0_6] : memref<16x256xbf16, #tpu.memory_space<vmem>>, vector<16x256xbf16>
    %cst_7 = arith.constant dense<0.000000e+00> : vector<16x256xf32>
    %6 = tpu.matmul %4, %5, %cst_7 {dimension_numbers = #tpu.dot_dimension_numbers<[1], [0], [0], [1], [0, 0, 1, 1], [], []>} : vector<16x16xbf16>, vector<16x256xbf16>, vector<16x256xf32> -> vector<16x256xf32>
    %7 = arith.addf %3, %6 : vector<16x256xf32>
    %c0_8 = arith.constant 0 : index
    %c0_9 = arith.constant 0 : index
    %8 = vector.load %arg5[%c0_8, %c0_9] : memref<1x256xf32, #tpu.memory_space<vmem>>, vector<1x256xf32>
    %9 = vector.broadcast %8 : vector<1x256xf32> to vector<16x256xf32>
    %10 = arith.addf %7, %9 : vector<16x256xf32>
    %cst_10 = arith.constant 0.000000e+00 : f32
    %11 = vector.broadcast %cst_10 : f32 to vector<16x256xf32>
    %12 = arith.maximumf %10, %11 : vector<16x256xf32>
    %13 = arith.truncf %12 : vector<16x256xf32> to vector<16x256xbf16>
    %c0_11 = arith.constant 0 : index
    %c0_12 = arith.constant 0 : index
    %14 = vector.load %arg6[%c0_11, %c0_12] : memref<256x256xbf16, #tpu.memory_space<vmem>>, vector<256x256xbf16>
    %cst_13 = arith.constant dense<0.000000e+00> : vector<16x256xf32>
    %15 = tpu.matmul %13, %14, %cst_13 {dimension_numbers = #tpu.dot_dimension_numbers<[1], [0], [0], [1], [0, 0, 1, 1], [], []>} : vector<16x256xbf16>, vector<256x256xbf16>, vector<16x256xf32> -> vector<16x256xf32>
    %c0_14 = arith.constant 0 : index
    %c0_15 = arith.constant 0 : index
    %16 = vector.load %arg7[%c0_14, %c0_15] : memref<1x256xf32, #tpu.memory_space<vmem>>, vector<1x256xf32>
    %17 = vector.broadcast %16 : vector<1x256xf32> to vector<16x256xf32>
    %18 = arith.addf %15, %17 : vector<16x256xf32>
    %cst_16 = arith.constant 0.000000e+00 : f32
    %19 = vector.broadcast %cst_16 : f32 to vector<16x256xf32>
    %20 = arith.maximumf %18, %19 : vector<16x256xf32>
    %c0_17 = arith.constant 0 : index
    %c0_18 = arith.constant 0 : index
    %21 = vector.load %arg8[%c0_17, %c0_18] : memref<1x256xf32, #tpu.memory_space<vmem>>, vector<1x256xf32>
    %22 = vector.broadcast %21 : vector<1x256xf32> to vector<16x256xf32>
    %23 = arith.mulf %20, %22 : vector<16x256xf32>
    %cst_19 = arith.constant dense<0.000000e+00> : vector<16xf32>
    %24 = vector.multi_reduction <add>, %23, %cst_19 [1] : vector<16x256xf32> to vector<16xf32>
    %25 = vector.shape_cast %24 : vector<16xf32> to vector<16x1xf32>
    %c0_20 = arith.constant 0 : index
    %c0_21 = arith.constant 0 : index
    %26 = vector.load %arg9[%c0_20, %c0_21] : memref<1x1xf32, #tpu.memory_space<vmem>>, vector<1x1xf32>
    %27 = vector.broadcast %26 : vector<1x1xf32> to vector<16x1xf32>
    %28 = arith.addf %25, %27 : vector<16x1xf32>
    %c0_22 = arith.constant 0 : index
    %c0_23 = arith.constant 0 : index
    %29 = vector.load %arg10[%c0_22, %c0_23] : memref<16x1xf32, #tpu.memory_space<vmem>>, vector<16x1xf32>
    tpu.vector_store %arg10[%c0_22, %c0_23], %28 {strides = array<i32>} : memref<16x1xf32, #tpu.memory_space<vmem>>, vector<16x1xf32>,
    return
  }
  func.func @transform_0(%arg0: i32) -> (i32, i32) {
    %c0_i32 = arith.constant 0 : i32
    %c0_i32_0 = arith.constant 0 : i32
    return %arg0, %c0_i32 : i32, i32
  }
  func.func @transform_1(%arg0: i32) -> (i32, i32) {
    %c0_i32 = arith.constant 0 : i32
    %c0_i32_0 = arith.constant 0 : i32
    return %arg0, %c0_i32 : i32, i32
  }
  func.func @transform_2(%arg0: i32) -> (i32, i32) {
    %c0_i32 = arith.constant 0 : i32
    %c0_i32_0 = arith.constant 0 : i32
    %c0_i32_1 = arith.constant 0 : i32
    return %c0_i32, %c0_i32_0 : i32, i32
  }
  func.func @transform_3(%arg0: i32) -> (i32, i32) {
    %c0_i32 = arith.constant 0 : i32
    %c0_i32_0 = arith.constant 0 : i32
    %c0_i32_1 = arith.constant 0 : i32
    return %c0_i32, %c0_i32_0 : i32, i32
  }
  func.func @transform_4(%arg0: i32) -> (i32, i32) {
    %c0_i32 = arith.constant 0 : i32
    %c0_i32_0 = arith.constant 0 : i32
    %c0_i32_1 = arith.constant 0 : i32
    return %c0_i32, %c0_i32_0 : i32, i32
  }
  func.func @transform_5(%arg0: i32) -> (i32, i32) {
    %c0_i32 = arith.constant 0 : i32
    %c0_i32_0 = arith.constant 0 : i32
    %c0_i32_1 = arith.constant 0 : i32
    return %c0_i32, %c0_i32_0 : i32, i32
  }
  func.func @transform_6(%arg0: i32) -> (i32, i32) {
    %c0_i32 = arith.constant 0 : i32
    %c0_i32_0 = arith.constant 0 : i32
    %c0_i32_1 = arith.constant 0 : i32
    return %c0_i32, %c0_i32_0 : i32, i32
  }
  func.func @transform_7(%arg0: i32) -> (i32, i32) {
    %c0_i32 = arith.constant 0 : i32
    %c0_i32_0 = arith.constant 0 : i32
    %c0_i32_1 = arith.constant 0 : i32
    return %c0_i32, %c0_i32_0 : i32, i32
  }
  func.func @transform_8(%arg0: i32) -> (i32, i32) {
    %c0_i32 = arith.constant 0 : i32
    %c0_i32_0 = arith.constant 0 : i32
    %c0_i32_1 = arith.constant 0 : i32
    return %c0_i32, %c0_i32_0 : i32, i32
  }
  func.func @transform_9(%arg0: i32) -> (i32, i32) {
    %c0_i32 = arith.constant 0 : i32
    %c0_i32_0 = arith.constant 0 : i32
    return %arg0, %c0_i32 : i32, i32
  }
}

</mosaic_0001>

<llo_original>
// kernel: qnetwork_forward.1
$region0: #{qnetwork_forward.1}
  #allocation0 [shape = 'u32[]', space=smem, size = 0x4, offset = 0x4, fixed_abs, tag = 'smem constant byte address 0x4 - core index']
  #allocation1 [shape = 'u32[144,128]{1,0:T(1,128)}', space=vmem, size = 0x12000, scoped, tag = 'internal scratch']
  #allocation2 [shape = 'f32[1,1]{1,0:T(1,128)S(1)}', space=vmem, size = 0x200, scoped, tag = 'scoped memory for qnetwork_forward.1']
  %s0 = inlined_call_operand.vmem [shape: f32[16,40], index: 0, kind: input, shape index: {}]
  %s1 = inlined_call_operand.vmem [shape: bf16[16,16], index: 1, kind: input, shape index: {}]
  %s2 = inlined_call_operand.vmem [shape: bf16[40,256], index: 2, kind: input, shape index: {}]
  %s3 = inlined_call_operand.hbm [shape: bf16[16,256], index: 3, kind: input, shape index: {}]
  %s4 = inlined_call_operand.vmem [shape: f32[1,256], index: 4, kind: input, shape index: {}]
  %s5 = inlined_call_operand.hbm [shape: bf16[256,256], index: 5, kind: input, shape index: {}]
  %s6 = inlined_call_operand.vmem [shape: f32[1,256], index: 6, kind: input, shape index: {}]
  %s7 = inlined_call_operand.vmem [shape: f32[1,256], index: 7, kind: input, shape index: {}]
  %s8 = inlined_call_operand.<no memory space> [shape: f32[1,1], index: 8, kind: input, shape index: {}]
  %s9 = inlined_call_operand.vmem [shape: f32[16,1], index: 9, kind: output, shape index: {}]
  %s10 = sld [smem:[#allocation0]]
  $region54: #{qnetwork_forward.1} parent=0
    _
  %s12 = ssub.s32 1, %s10
  %s13 = scalar_select 0, %s12, %s10
  %v14 = vstv %s8
  %15 = vst [vmem:[#allocation2] sm:$0x1] %v14
  $region1: #{qnetwork_forward.1} parent=0
    #allocation3 [shape = 'u8[8192]{0}', space=vmem, size = 0x2000, scoped, tag = 'input window, operand 3, single buffered']
    #allocation4 [shape = 's32[1]{0}', space=sflag, size = 0x4, scoped, tag = 'scoped memory for qnetwork_forward.1']
    #allocation5 [shape = 'u8[131072]{0}', space=vmem, size = 0x20000, scoped, tag = 'input window, operand 5, single buffered']
    #allocation6 [shape = 's32[1]{0}', space=sflag, size = 0x4, scoped, tag = 'scoped memory for qnetwork_forward.1']
    %16 = vsyncpa [#allocation4], 0
    %17 = vsyncpa [#allocation6], 0
    // Predicated region
    $region2: #{qnetwork_forward.1} parent=1 // pred_check
      _
    $region3: #{qnetwork_forward.1} parent=1 // pred_check_branch
      %19 = sbr.rel (0) target = $region5
    $region4: #{qnetwork_forward.1} parent=1 // pred_region
      _
    $region5: #{qnetwork_forward.1} parent=1 // pred_fallthru
      _
    // Predicated region
    $region6: #{qnetwork_forward.1} parent=1 // pred_check
      _
    $region7: #{qnetwork_forward.1} parent=1 // pred_check_branch
      %21 = sbr.rel (0) target = $region9
    $region8: #{qnetwork_forward.1} parent=1 // pred_region
      _
    $region9: #{qnetwork_forward.1} parent=1 // pred_fallthru
      _
    // Predicated region
    $region10: #{qnetwork_forward.1} parent=1 // pred_check
      _
    $region11: #{qnetwork_forward.1} parent=1 // pred_check_branch
      %23 = sbr.rel (0) target = $region13
    $region12: #{qnetwork_forward.1} parent=1 // pred_region
      _
    $region13: #{qnetwork_forward.1} parent=1 // pred_fallthru
      _
    // Predicated region
    $region14: #{qnetwork_forward.1} parent=1 // pred_check
      _
    $region15: #{qnetwork_forward.1} parent=1 // pred_check_branch
      %25 = sbr.rel (0) target = $region17
    $region16: #{qnetwork_forward.1} parent=1 // pred_region
      %s27 = ssub.s32 256, 256
      %28 = vsyncadd [#allocation4], %s27
      %s29 = sshll.u32 [#allocation3], 4
      %s30 = int_to_ptr.vmem [resolvable:$true] %s29
      %35 = dma.hbm_to_vmem [thread:$0]  %s3, 256, %s30, [#allocation4], 128, 128, 8
    $region17: #{qnetwork_forward.1} parent=1 // pred_fallthru
      _
    // Predicated region
    $region18: #{qnetwork_forward.1} parent=1 // pred_check
      _
    $region19: #{qnetwork_forward.1} parent=1 // pred_check_branch
      %37 = sbr.rel (0) target = $region21
    $region20: #{qnetwork_forward.1} parent=1 // pred_region
      _
    $region21: #{qnetwork_forward.1} parent=1 // pred_fallthru
      _
    // Predicated region
    $region22: #{qnetwork_forward.1} parent=1 // pred_check
      _
    $region23: #{qnetwork_forward.1} parent=1 // pred_check_branch
      %39 = sbr.rel (0) target = $region25
    $region24: #{qnetwork_forward.1} parent=1 // pred_region
      %s41 = ssub.s32 4096, 4096
      %42 = vsyncadd [#allocation6], %s41
      %s43 = sshll.u32 [#allocation5], 4
      %s44 = int_to_ptr.vmem [resolvable:$true] %s43
      %49 = dma.hbm_to_vmem [thread:$0]  %s5, 4096, %s44, [#allocation6], 128, 128, 8
    $region25: #{qnetwork_forward.1} parent=1 // pred_fallthru
      _
    // Predicated region
    $region26: #{qnetwork_forward.1} parent=1 // pred_check
      _
    $region27: #{qnetwork_forward.1} parent=1 // pred_check_branch
      %51 = sbr.rel (0) target = $region29
    $region28: #{qnetwork_forward.1} parent=1 // pred_region
      _
    $region29: #{qnetwork_forward.1} parent=1 // pred_fallthru
      _
    // Predicated region
    $region30: #{qnetwork_forward.1} parent=1 // pred_check
      _
    $region31: #{qnetwork_forward.1} parent=1 // pred_check_branch
      %53 = sbr.rel (0) target = $region33
    $region32: #{qnetwork_forward.1} parent=1 // pred_region
      _
    $region33: #{qnetwork_forward.1} parent=1 // pred_fallthru
      _
    // Predicated region
    $region34: #{qnetwork_forward.1} parent=1 // pred_check
      _
    $region35: #{qnetwork_forward.1} parent=1 // pred_check_branch
      %55 = sbr.rel (0) target = $region37
    $region36: #{qnetwork_forward.1} parent=1 // pred_region
      _
    $region37: #{qnetwork_forward.1} parent=1 // pred_fallthru
      _
    // Predicated region
    $region38: #{qnetwork_forward.1} parent=1 // pred_check
      _
    $region39: #{qnetwork_forward.1} parent=1 // pred_check_branch
      %57 = sbr.rel (0) target = $region41
    $region40: #{qnetwork_forward.1} parent=1 // pred_region
      %58 = dma.done [#allocation4], 256
    $region41: #{qnetwork_forward.1} parent=1 // pred_fallthru
      _
    // Predicated region
    $region42: #{qnetwork_forward.1} parent=1 // pred_check
      _
    $region43: #{qnetwork_forward.1} parent=1 // pred_check_branch
      %60 = sbr.rel (0) target = $region45
    $region44: #{qnetwork_forward.1} parent=1 // pred_region
      %61 = dma.done [#allocation6], 4096
    $region45: #{qnetwork_forward.1} parent=1 // pred_fallthru
      _
    %v63 = vld [vmem:[%s0] sm:$0xff]
    %v64 = vld [vmem:[%s0 + $0x8] sm:$0xff]
    %v65 = vpack.c.bf16 %v64, %v63
    %v66 = vld [vmem:[%s2] sm:$0xff]
    %v67 = vld [vmem:[%s2 + $0x8] sm:$0xff]
    %v68 = vld [vmem:[%s2 + $0x10] sm:$0xff]
    %v69 = vld [vmem:[%s2 + $0x18] sm:$0xff]
    %v70 = vld [vmem:[%s2 + $0x20] sm:$0xff]
    %v71 = vld [vmem:[%s1] sm:$0xf]
    %v72 = vld [vmem:[%s1 + $0x4] sm:$0xf]
    %v73 = vld [vmem:[#allocation3] sm:$0xff]
    %v74 = vld [vmem:[#allocation3 + $0x8] sm:$0xff]
    %v77 = vunpack.c.l.b16 %v71
    %v78 = vunpack.c.l.b16 %v72
    %v79 = vpack.c.b16 %v78, %v77
    %v82 = vunpack.c.l.b16 %v73
    %v83 = vunpack.c.h.b16 %v73
    %v84 = vunpack.c.l.b16 %v74
    %v85 = vunpack.c.h.b16 %v74
    %v86 = vpack.c.b16 %v84, %v82
    %v87 = vpack.c.b16 %v85, %v83
    %vm90 = vcmask 130048
    %v92 = vsel %vm90, %v79, 0
    %94 = vmatprep.subr.bf16.mxu0 %v87
    %95 = vmatpush1.bf16.msra.mxu0 %v86
    %96 = vmatprep.subr.bf16.mxu0 0
    %97 = vmatpush1.bf16.msra.mxu0 0
    %98 = vmatprep.subr.bf16.mxu0 0
    %99 = vmatpush1.bf16.msra.mxu0 0
    %100 = vmatprep.subr.bf16.mxu0 0
    %101 = vmatpush1.bf16.msra.mxu0 0
    %102 = vmatprep.subr.bf16.mxu0 0
    %103 = vmatpush1.bf16.msra.mxu0 0
    %104 = vmatprep.subr.bf16.mxu0 0
    %105 = vmatpush1.bf16.msra.mxu0 0
    %106 = vmatprep.subr.bf16.mxu0 0
    %107 = vmatpush1.bf16.msra.mxu0 0
    %108 = vmatprep.subr.bf16.mxu0 0
    %109 = vmatpush1.bf16.msra.mxu0 0
    %110 = vmatprep.subr.bf16.mxu0 0
    %111 = vmatpush1.bf16.msra.mxu0 0
    %112 = vmatprep.subr.bf16.mxu0 0
    %113 = vmatpush1.bf16.msra.mxu0 0
    %114 = vmatprep.subr.bf16.mxu0 0
    %115 = vmatpush1.bf16.msra.mxu0 0
    %116 = vmatprep.subr.bf16.mxu0 0
    %117 = vmatpush1.bf16.msra.mxu0 0
    %118 = vmatprep.subr.bf16.mxu0 0
    %119 = vmatpush1.bf16.msra.mxu0 0
    %120 = vmatprep.subr.bf16.mxu0 0
    %121 = vmatpush1.bf16.msra.mxu0 0
    %122 = vmatprep.subr.bf16.mxu0 0
    %123 = vmatpush1.bf16.msra.mxu0 0
    %124 = vmatprep.subr.bf16.mxu0 0
    %125 = vmatpush1.bf16.msra.mxu0 0
    %126 = vmatprep.mubr.bf16.mxu0 0
    %127 = vmatmul.mubr.bf16.gmra.mrb[0].mxu0 %v92
    %v128 = vpop.f32.mrb[0].mxu0
    %v129 = vadd.f32 0.0, %v128
    %v130 = vpop.f32.mrb[0].mxu0
    %v131 = vadd.f32 0.0, %v130
    %v132 = vpop.f32.mrb[0].mxu0
    %v133 = vadd.f32 0.0, %v132
    %v134 = vpop.f32.mrb[0].mxu0
    %v135 = vadd.f32 0.0, %v134
    %136 = vdwg.mxu0
    %v142 = vunpack.c.l.b16 %v66
    %v143 = vunpack.c.h.b16 %v66
    %v144 = vunpack.c.l.b16 %v67
    %v145 = vunpack.c.h.b16 %v67
    %v146 = vunpack.c.l.b16 %v68
    %v147 = vunpack.c.h.b16 %v68
    %v148 = vunpack.c.l.b16 %v69
    %v149 = vunpack.c.h.b16 %v69
    %v150 = vunpack.c.l.b16 %v70
    %v151 = vunpack.c.h.b16 %v70
    %v152 = vpack.c.b16 %v144, %v142
    %v153 = vpack.c.b16 %v145, %v143
    %v154 = vpack.c.b16 %v148, %v146
    %v155 = vpack.c.b16 %v149, %v147
    %v156 = vpack.c.b16 %v150, %v150
    %v157 = vpack.c.b16 %v151, %v151
    %vm162 = vcmask 326656
    %v164 = vsel %vm162, %v65, 0
    %vm166 = vcmask 1043456
    %v168 = vsel %vm166, %v156, 0
    %v171 = vsel %vm166, %v157, 0
    %173 = vmatprep.subr.bf16.mxu0 %v153
    %174 = vmatpush1.bf16.msra.mxu0 %v152
    %175 = vmatprep.subr.bf16.mxu0 %v155
    %176 = vmatpush1.bf16.msra.mxu0 %v154
    %177 = vmatprep.subr.bf16.mxu0 %v171
    %178 = vmatpush1.bf16.msra.mxu0 %v168
    %179 = vmatprep.subr.bf16.mxu0 0
    %180 = vmatpush1.bf16.msra.mxu0 0
    %181 = vmatprep.subr.bf16.mxu0 0
    %182 = vmatpush1.bf16.msra.mxu0 0
    %183 = vmatprep.subr.bf16.mxu0 0
    %184 = vmatpush1.bf16.msra.mxu0 0
    %185 = vmatprep.subr.bf16.mxu0 0
    %186 = vmatpush1.bf16.msra.mxu0 0
    %187 = vmatprep.subr.bf16.mxu0 0
    %188 = vmatpush1.bf16.msra.mxu0 0
    %189 = vmatprep.subr.bf16.mxu0 0
    %190 = vmatpush1.bf16.msra.mxu0 0
    %191 = vmatprep.subr.bf16.mxu0 0
    %192 = vmatpush1.bf16.msra.mxu0 0
    %193 = vmatprep.subr.bf16.mxu0 0
    %194 = vmatpush1.bf16.msra.mxu0 0
    %195 = vmatprep.subr.bf16.mxu0 0
    %196 = vmatpush1.bf16.msra.mxu0 0
    %197 = vmatprep.subr.bf16.mxu0 0
    %198 = vmatpush1.bf16.msra.mxu0 0
    %199 = vmatprep.subr.bf16.mxu0 0
    %200 = vmatpush1.bf16.msra.mxu0 0
    %201 = vmatprep.subr.bf16.mxu0 0
    %202 = vmatpush1.bf16.msra.mxu0 0
    %203 = vmatprep.subr.bf16.mxu0 0
    %204 = vmatpush1.bf16.msra.mxu0 0
    %205 = vmatprep.mubr.bf16.mxu0 0
    %206 = vmatmul.mubr.bf16.gmra.mrb[0].mxu0 %v164
    %v207 = vpop.f32.mrb[0].mxu0
    %v208 = vadd.f32 %v129, %v207
    %v209 = vpop.f32.mrb[0].mxu0
    %v210 = vadd.f32 %v131, %v209
    %v211 = vpop.f32.mrb[0].mxu0
    %v212 = vadd.f32 %v133, %v211
    %v213 = vpop.f32.mrb[0].mxu0
    %v214 = vadd.f32 %v135, %v213
    %215 = vdwg.mxu0
    %v216 = vld [vmem:[%s4] sm:$0x3]
    %v218 = vlaneseq
    %v219 = vshrl.u32 %v218, 7
    %v220 = vsub.s32 0, %v219
    %v221 = vrot.slane %v216, %v220
    %v222 = vlaneseq
    %v223 = vshrl.u32 %v222, 7
    %v224 = vsub.s32 1, %v223
    %v225 = vrot.slane %v216, %v224
    %v228 = vadd.f32 %v208, %v221
    %v229 = vadd.f32 %v210, %v225
    %v230 = vadd.f32 %v212, %v221
    %v231 = vadd.f32 %v214, %v225
    %v232 = vmax.f32 %v228, 0.0
    %v233 = vmax.f32 %v229, 0.0
    %v234 = vmax.f32 %v230, 0.0
    %v235 = vmax.f32 %v231, 0.0
    %v236 = vpack.c.bf16 %v234, %v232
    %v237 = vpack.c.bf16 %v235, %v233
    %v238 = vld [vmem:[#allocation5] sm:$0xff]
    %v239 = vld [vmem:[#allocation5 + $0x8] sm:$0xff]
    %v240 = vld [vmem:[#allocation5 + $0x10] sm:$0xff]
    %v241 = vld [vmem:[#allocation5 + $0x18] sm:$0xff]
    %v242 = vld [vmem:[#allocation5 + $0x20] sm:$0xff]
    %v243 = vld [vmem:[#allocation5 + $0x28] sm:$0xff]
    %v244 = vld [vmem:[#allocation5 + $0x30] sm:$0xff]
    %v245 = vld [vmem:[#allocation5 + $0x38] sm:$0xff]
    %v246 = vld [vmem:[#allocation5 + $0x40] sm:$0xff]
    %v247 = vld [vmem:[#allocation5 + $0x48] sm:$0xff]
    %v248 = vld [vmem:[#allocation5 + $0x50] sm:$0xff]
    %v249 = vld [vmem:[#allocation5 + $0x58] sm:$0xff]
    %v250 = vld [vmem:[#allocation5 + $0x60] sm:$0xff]
    %v251 = vld [vmem:[#allocation5 + $0x68] sm:$0xff]
    %v252 = vld [vmem:[#allocation5 + $0x70] sm:$0xff]
    %v253 = vld [vmem:[#allocation5 + $0x78] sm:$0xff]
    %v254 = vld [vmem:[#allocation5 + $0x80] sm:$0xff]
    %v255 = vld [vmem:[#allocation5 + $0x88] sm:$0xff]
    %v256 = vld [vmem:[#allocation5 + $0x90] sm:$0xff]
    %v257 = vld [vmem:[#allocation5 + $0x98] sm:$0xff]
    %v258 = vld [vmem:[#allocation5 + $0xa0] sm:$0xff]
    %v259 = vld [vmem:[#allocation5 + $0xa8] sm:$0xff]
    %v260 = vld [vmem:[#allocation5 + $0xb0] sm:$0xff]
    %v261 = vld [vmem:[#allocation5 + $0xb8] sm:$0xff]
    %v262 = vld [vmem:[#allocation5 + $0xc0] sm:$0xff]
    %v263 = vld [vmem:[#allocation5 + $0xc8] sm:$0xff]
    %v264 = vld [vmem:[#allocation5 + $0xd0] sm:$0xff]
    %v265 = vld [vmem:[#allocation5 + $0xd8] sm:$0xff]
    %v266 = vld [vmem:[#allocation5 + $0xe0] sm:$0xff]
    %v267 = vld [vmem:[#allocation5 + $0xe8] sm:$0xff]
    %v268 = vld [vmem:[#allocation5 + $0xf0] sm:$0xff]
    %v269 = vld [vmem:[#allocation5 + $0xf8] sm:$0xff]
    %v270 = vld [vmem:[%s6] sm:$0x3]
    %v272 = vlaneseq
    %v273 = vshrl.u32 %v272, 7
    %v274 = vsub.s32 0, %v273
    %v275 = vrot.slane %v270, %v274
    %v276 = vlaneseq
    %v277 = vshrl.u32 %v276, 7
    %v278 = vsub.s32 1, %v277
    %v279 = vrot.slane %v270, %v278
    %v314 = vunpack.c.l.b16 %v238
    %v315 = vunpack.c.h.b16 %v238
    %v316 = vunpack.c.l.b16 %v239
    %v317 = vunpack.c.h.b16 %v239
    %v318 = vunpack.c.l.b16 %v240
    %v319 = vunpack.c.h.b16 %v240
    %v320 = vunpack.c.l.b16 %v241
    %v321 = vunpack.c.h.b16 %v241
    %v322 = vunpack.c.l.b16 %v242
    %v323 = vunpack.c.h.b16 %v242
    %v324 = vunpack.c.l.b16 %v243
    %v325 = vunpack.c.h.b16 %v243
    %v326 = vunpack.c.l.b16 %v244
    %v327 = vunpack.c.h.b16 %v244
    %v328 = vunpack.c.l.b16 %v245
    %v329 = vunpack.c.h.b16 %v245
    %v330 = vunpack.c.l.b16 %v246
    %v331 = vunpack.c.h.b16 %v246
    %v332 = vunpack.c.l.b16 %v247
    %v333 = vunpack.c.h.b16 %v247
    %v334 = vunpack.c.l.b16 %v248
    %v335 = vunpack.c.h.b16 %v248
    %v336 = vunpack.c.l.b16 %v249
    %v337 = vunpack.c.h.b16 %v249
    %v338 = vunpack.c.l.b16 %v250
    %v339 = vunpack.c.h.b16 %v250
    %v340 = vunpack.c.l.b16 %v251
    %v341 = vunpack.c.h.b16 %v251
    %v342 = vunpack.c.l.b16 %v252
    %v343 = vunpack.c.h.b16 %v252
    %v344 = vunpack.c.l.b16 %v253
    %v345 = vunpack.c.h.b16 %v253
    %v346 = vunpack.c.l.b16 %v254
    %v347 = vunpack.c.h.b16 %v254
    %v348 = vunpack.c.l.b16 %v255
    %v349 = vunpack.c.h.b16 %v255
    %v350 = vunpack.c.l.b16 %v256
    %v351 = vunpack.c.h.b16 %v256
    %v352 = vunpack.c.l.b16 %v257
    %v353 = vunpack.c.h.b16 %v257
    %v354 = vunpack.c.l.b16 %v258
    %v355 = vunpack.c.h.b16 %v258
    %v356 = vunpack.c.l.b16 %v259
    %v357 = vunpack.c.h.b16 %v259
    %v358 = vunpack.c.l.b16 %v260
    %v359 = vunpack.c.h.b16 %v260
    %v360 = vunpack.c.l.b16 %v261
    %v361 = vunpack.c.h.b16 %v261
    %v362 = vunpack.c.l.b16 %v262
    %v363 = vunpack.c.h.b16 %v262
    %v364 = vunpack.c.l.b16 %v263
    %v365 = vunpack.c.h.b16 %v263
    %v366 = vunpack.c.l.b16 %v264
    %v367 = vunpack.c.h.b16 %v264
    %v368 = vunpack.c.l.b16 %v265
    %v369 = vunpack.c.h.b16 %v265
    %v370 = vunpack.c.l.b16 %v266
    %v371 = vunpack.c.h.b16 %v266
    %v372 = vunpack.c.l.b16 %v267
    %v373 = vunpack.c.h.b16 %v267
    %v374 = vunpack.c.l.b16 %v268
    %v375 = vunpack.c.h.b16 %v268
    %v376 = vunpack.c.l.b16 %v269
    %v377 = vunpack.c.h.b16 %v269
    %v378 = vpack.c.b16 %v316, %v314
    %v379 = vpack.c.b16 %v317, %v315
    %v380 = vpack.c.b16 %v320, %v318
    %v381 = vpack.c.b16 %v321, %v319
    %v382 = vpack.c.b16 %v324, %v322
    %v383 = vpack.c.b16 %v325, %v323
    %v384 = vpack.c.b16 %v328, %v326
    %v385 = vpack.c.b16 %v329, %v327
    %v386 = vpack.c.b16 %v332, %v330
    %v387 = vpack.c.b16 %v333, %v331
    %v388 = vpack.c.b16 %v336, %v334
    %v389 = vpack.c.b16 %v337, %v335
    %v390 = vpack.c.b16 %v340, %v338
    %v391 = vpack.c.b16 %v341, %v339
    %v392 = vpack.c.b16 %v344, %v342
    %v393 = vpack.c.b16 %v345, %v343
    %v394 = vpack.c.b16 %v348, %v346
    %v395 = vpack.c.b16 %v349, %v347
    %v396 = vpack.c.b16 %v352, %v350
    %v397 = vpack.c.b16 %v353, %v351
    %v398 = vpack.c.b16 %v356, %v354
    %v399 = vpack.c.b16 %v357, %v355
    %v400 = vpack.c.b16 %v360, %v358
    %v401 = vpack.c.b16 %v361, %v359
    %v402 = vpack.c.b16 %v364, %v362
    %v403 = vpack.c.b16 %v365, %v363
    %v404 = vpack.c.b16 %v368, %v366
    %v405 = vpack.c.b16 %v369, %v367
    %v406 = vpack.c.b16 %v372, %v370
    %v407 = vpack.c.b16 %v373, %v371
    %v408 = vpack.c.b16 %v376, %v374
    %v409 = vpack.c.b16 %v377, %v375
    %442 = vmatprep.subr.bf16.mxu0 %v379
    %443 = vmatpush1.bf16.msra.mxu0 %v378
    %444 = vmatprep.subr.bf16.mxu0 %v381
    %445 = vmatpush1.bf16.msra.mxu0 %v380
    %446 = vmatprep.subr.bf16.mxu0 %v383
    %447 = vmatpush1.bf16.msra.mxu0 %v382
    %448 = vmatprep.subr.bf16.mxu0 %v385
    %449 = vmatpush1.bf16.msra.mxu0 %v384
    %450 = vmatprep.subr.bf16.mxu0 %v387
    %451 = vmatpush1.bf16.msra.mxu0 %v386
    %452 = vmatprep.subr.bf16.mxu0 %v389
    %453 = vmatpush1.bf16.msra.mxu0 %v388
    %454 = vmatprep.subr.bf16.mxu0 %v391
    %455 = vmatpush1.bf16.msra.mxu0 %v390
    %456 = vmatprep.subr.bf16.mxu0 %v393
    %457 = vmatpush1.bf16.msra.mxu0 %v392
    %458 = vmatprep.subr.bf16.mxu0 %v395
    %459 = vmatpush1.bf16.msra.mxu0 %v394
    %460 = vmatprep.subr.bf16.mxu0 %v397
    %461 = vmatpush1.bf16.msra.mxu0 %v396
    %462 = vmatprep.subr.bf16.mxu0 %v399
    %463 = vmatpush1.bf16.msra.mxu0 %v398
    %464 = vmatprep.subr.bf16.mxu0 %v401
    %465 = vmatpush1.bf16.msra.mxu0 %v400
    %466 = vmatprep.subr.bf16.mxu0 %v403
    %467 = vmatpush1.bf16.msra.mxu0 %v402
    %468 = vmatprep.subr.bf16.mxu0 %v405
    %469 = vmatpush1.bf16.msra.mxu0 %v404
    %470 = vmatprep.subr.bf16.mxu0 %v407
    %471 = vmatpush1.bf16.msra.mxu0 %v406
    %472 = vmatprep.subr.bf16.mxu0 %v409
    %473 = vmatpush1.bf16.msra.mxu0 %v408
    %474 = vmatprep.mubr.bf16.mxu0 %v237
    %475 = vmatmul.mubr.bf16.gmra.mrb[0].mxu0 %v236
    %v476 = vpop.f32.mrb[0].mxu0
    %v477 = vadd.f32 %v275, %v476
    %v478 = vpop.f32.mrb[0].mxu0
    %v479 = vadd.f32 %v279, %v478
    %v480 = vpop.f32.mrb[0].mxu0
    %v481 = vadd.f32 %v275, %v480
    %v482 = vpop.f32.mrb[0].mxu0
    %v483 = vadd.f32 %v279, %v482
    %484 = vdwg.mxu0
    %v485 = vmax.f32 %v477, 0.0
    %v486 = vmax.f32 %v479, 0.0
    %v487 = vmax.f32 %v481, 0.0
    %v488 = vmax.f32 %v483, 0.0
    %v489 = vld [vmem:[%s7] sm:$0x3]
    %v491 = vlaneseq
    %v492 = vshrl.u32 %v491, 7
    %v493 = vsub.s32 0, %v492
    %v494 = vrot.slane %v489, %v493
    %v495 = vlaneseq
    %v496 = vshrl.u32 %v495, 7
    %v497 = vsub.s32 1, %v496
    %v498 = vrot.slane %v489, %v497
    %v501 = vmul.f32 %v485, %v494
    %v502 = vmul.f32 %v486, %v498
    %v503 = vmul.f32 %v487, %v494
    %v504 = vmul.f32 %v488, %v498
    %v505 = vadd.f32 %v501, %v502
    %506 = vadd.xlane.f32.xlu0 %v505
    %v507 = vpop.xlane.xlu0 %506
    %v508 = vadd.f32 %v503, %v504
    %509 = vadd.xlane.f32.xlu0 %v508
    %v510 = vpop.xlane.xlu0 %509
    %v511 = vld [vmem:[#allocation2] sm:$0x1]
    %v513 = vlaneseq
    %v514 = vshrl.u32 %v513, 7
    %v515 = vsub.s32 0, %v514
    %v516 = vrot.slane %v511, %v515
    %v518 = vadd.f32 %v507, %v516
    %v519 = vadd.f32 %v510, %v516
    %vm520 = vcmask 7168
    %521 = vst.msk [vmem:[%s9] sm:$0xff] %vm520, %v518
    %522 = vst.msk [vmem:[%s9 + $0x8] sm:$0xff] %vm520, %v519
    // Predicated region
    $region46: #{qnetwork_forward.1} parent=1 // pred_check
      _
    $region47: #{qnetwork_forward.1} parent=1 // pred_check_branch
      %524 = sbr.rel (0) target = $region49
    $region48: #{qnetwork_forward.1} parent=1 // pred_region
      _
    $region49: #{qnetwork_forward.1} parent=1 // pred_fallthru
      _
    // Predicated region
    $region50: #{qnetwork_forward.1} parent=1 // pred_check
      _
    $region51: #{qnetwork_forward.1} parent=1 // pred_check_branch
      %526 = sbr.rel (0) target = $region53
    $region52: #{qnetwork_forward.1} parent=1 // pred_region
      _
    $region53: #{qnetwork_forward.1} parent=1 // pred_fallthru
      _
    %527 = vsyncpa [#allocation4], 1
    %528 = vsyncpa [#allocation6], 1

</llo_original>
